<compile_context>
chip_gen: v5e
topology: v5e:2x2
jax: 0.10.0
libtpu: 0.0.40
codegen_flags: <defaults>
</compile_context>

<pallas_src>
import math
from functools import partial

import jax
import jax.numpy as jnp
from jax.experimental import pallas as pl
from jax.experimental.pallas import tpu as pltpu


# ----------------------------------------------------------------------------
# pe buffer construction (module __init__ glue, not the forward hot path)
# ----------------------------------------------------------------------------
def make_positional_encoding(d_model: int, max_len: int = 5000,
                             dtype=jnp.float32) -> jnp.ndarray:
    position = jnp.arange(max_len, dtype=jnp.float32)[:, None]            # (max_len, 1)
    div_term = jnp.exp(jnp.arange(0, d_model, 2, dtype=jnp.float32)
                       * (-math.log(10000.0) / d_model))                  # (d_model/2,)
    pe = jnp.zeros((max_len, 1, d_model), dtype=jnp.float32)
    pe = pe.at[:, 0, 0::2].set(jnp.sin(position * div_term))
    pe = pe.at[:, 0, 1::2].set(jnp.cos(position * div_term))
    return pe.astype(dtype)


# ----------------------------------------------------------------------------
# Kernels
# ----------------------------------------------------------------------------
def pe_add_kernel(x_ref, pe_ref, o_ref):
    # x_ref: (TS, B, D), pe_ref: (TS, 1, D) -> broadcast add over the batch axis
    o_ref[...] = (x_ref[...] + pe_ref[...]).astype(o_ref.dtype)


def pe_add_dropout_kernel(x_ref, pe_ref, bits_ref, o_ref, *, threshold, inv_keep):
    # Training-mode forward: (x + pe) with inverted dropout.
    # keep iff bits < threshold (threshold = keep_prob * 2^32), scale by 1/keep_prob.
    y = x_ref[...] + pe_ref[...]
    keep = bits_ref[...] < jnp.uint32(threshold)
    o_ref[...] = jnp.where(keep, y * inv_keep, 0.0).astype(o_ref.dtype)


# ----------------------------------------------------------------------------
# Wrapper (module forward)
# ----------------------------------------------------------------------------
def _choose_tile_s(S, B, D, itemsize, target_bytes=2 << 20):
    """Pick a sequence tile so each x/out block is ~2 MiB (fits default scoped
    VMEM with double-buffering on v5e/v6e/v7x while amortizing per-step cost)."""
    rows = max(1, target_bytes // max(1, B * D * itemsize))
    rows = min(S, int(rows))
    if rows >= 8:
        rows = (rows // 8) * 8
    return rows


def positional_encoding_forward(x, pe, *, dropout_p=0.1, training=False,
                                rng_key=None):
    """x: (S, B, D); pe: (max_len, 1, D). Returns (S, B, D)."""
    S, B, D = x.shape

    # Mirror the module's debug prints.
    print(f'Input Embeddings (ver1): {x.shape}')
    print(f'Positional Encodings (ver1): {(S, 1, D)}')

    ts = _choose_tile_s(S, B, D, jnp.dtype(x.dtype).itemsize)
    grid = (pl.cdiv(S, ts),)

    compiler_params = pltpu.CompilerParams(
        dimension_semantics=("parallel",),          # shard tiles across TCs (v7x)
        vmem_limit_bytes=32 * 1024 * 1024,
    )

    # Last two block dims equal the full array dims (B, D) -> layout-legal for
    # any B, D; lane/sublane dense whenever D % 128 == 0 and B >= 8.
    x_spec   = pl.BlockSpec((ts, B, D), lambda i: (i, 0, 0))
    pe_spec  = pl.BlockSpec((ts, 1, D), lambda i: (i, 0, 0))   # windows into full pe
    out_spec = pl.BlockSpec((ts, B, D), lambda i: (i, 0, 0))
    out_shape = jax.ShapeDtypeStruct((S, B, D), x.dtype)

    if (not training) or dropout_p == 0.0:
        # Eval mode: dropout is identity.
        return pl.pallas_call(
            pe_add_kernel,
            out_shape=out_shape,
            grid=grid,
            in_specs=[x_spec, pe_spec],
            out_specs=out_spec,
            compiler_params=compiler_params,
        )(x, pe)

    # Training mode: fused add + inverted dropout.
    # Random bits come from jax.random (portable: the TPU hardware-PRNG
    # primitive has no CPU-interpret lowering). Each element gets its own bits,
    # so tiling cannot reuse a mask across tiles.
    keep_prob = 1.0 - float(dropout_p)
    threshold = min(int(round(keep_prob * 2.0 ** 32)), 2 ** 32 - 1)
    if rng_key is None:
        rng_key = jax.random.PRNGKey(0)
    bits = jax.random.bits(rng_key, (S, B, D), dtype=jnp.uint32)
    bits_spec = pl.BlockSpec((ts, B, D), lambda i: (i, 0, 0))

    return pl.pallas_call(
        partial(pe_add_dropout_kernel,
                threshold=threshold, inv_keep=1.0 / keep_prob),
        out_shape=out_shape,
        grid=grid,
        in_specs=[x_spec, pe_spec, bits_spec],
        out_specs=out_spec,
        compiler_params=compiler_params,
    )(x, pe, bits)


# ----------------------------------------------------------------------------
# Demo / correctness check
# ----------------------------------------------------------------------------
if __name__ == "__main__":
    d_model = 128     # multiple of 128 -> lane-dense vregs / unmasked stores
    seq_len = 8
    batch = 8         # >= 8 -> sublane-dense
    max_len = 5000

    key = jax.random.PRNGKey(0)
    x = jax.random.normal(key, (seq_len, batch, d_model), dtype=jnp.float32)
    pe = make_positional_encoding(d_model, max_len=max_len, dtype=jnp.float32)

    # Eval-mode forward (dropout = identity): must match the reference exactly.
    out_eval = positional_encoding_forward(x, pe, dropout_p=0.1, training=False)
    out_eval = jax.block_until_ready(out_eval)
    ref = x + pe[:seq_len]
    assert out_eval.shape == (seq_len, batch, d_model)
    assert jnp.allclose(out_eval, ref, atol=1e-6, rtol=1e-6), "eval-mode mismatch"

    # Training-mode forward (inverted dropout): deterministic given the rng key,
    # so we can check it exactly against the same mask recomputed host-side.
    # NOTE: dropout cannot bit-match torch's RNG; semantics (keep w.p. 1-p,
    # scale by 1/(1-p)) are reproduced.
    drop_key = jax.random.PRNGKey(1234)
    out_train = positional_encoding_forward(x, pe, dropout_p=0.1, training=True,
                                            rng_key=drop_key)
    out_train = jax.block_until_ready(out_train)

    keep_prob = 0.9
    threshold = min(int(round(keep_prob * 2.0 ** 32)), 2 ** 32 - 1)
    bits_ref = jax.random.bits(drop_key, (seq_len, batch, d_model), dtype=jnp.uint32)
    keep_ref = bits_ref < jnp.uint32(threshold)
    ref_train = jnp.where(keep_ref, ref * (1.0 / keep_prob), 0.0)
    assert jnp.allclose(out_train, ref_train, atol=1e-5, rtol=1e-5), \
        "training-mode dropout mismatch"

    print("KERNEL_OK")
</pallas_src>

<mosaic_0001>
module attributes {stable_mosaic.version = 11 : i64} {
  func.func @pe_add_kernel(%arg0: i32, %arg1: memref<8x8x128xf32, #tpu.memory_space<vmem>>, %arg2: memref<8x1x128xf32, #tpu.memory_space<vmem>>, %arg3: memref<8x8x128xf32, #tpu.memory_space<vmem>>) attributes {dimension_semantics = [#tpu.dimension_semantics<parallel>], iteration_bounds = array<i64: 1>, scalar_prefetch = 0 : i64, scratch_operands = 0 : i64, tpu.core_type = #tpu.core_type<tc>, window_params = [{transform_indices = @transform_0, window_bounds = array<i64: 8, 8, 128>}, {transform_indices = @transform_1, window_bounds = array<i64: 8, 1, 128>}, {transform_indices = @transform_2, window_bounds = array<i64: 8, 8, 128>}]} {
    %c0 = arith.constant 0 : index
    %c0_0 = arith.constant 0 : index
    %c0_1 = arith.constant 0 : index
    %0 = vector.load %arg1[%c0, %c0_0, %c0_1] : memref<8x8x128xf32, #tpu.memory_space<vmem>>, vector<8x8x128xf32>
    %c0_2 = arith.constant 0 : index
    %c0_3 = arith.constant 0 : index
    %c0_4 = arith.constant 0 : index
    %1 = vector.load %arg2[%c0_2, %c0_3, %c0_4] : memref<8x1x128xf32, #tpu.memory_space<vmem>>, vector<8x1x128xf32>
    %2 = vector.broadcast %1 : vector<8x1x128xf32> to vector<8x8x128xf32>
    %3 = arith.addf %0, %2 : vector<8x8x128xf32>
    %c0_5 = arith.constant 0 : index
    %c0_6 = arith.constant 0 : index
    %c0_7 = arith.constant 0 : index
    %4 = vector.load %arg3[%c0_5, %c0_6, %c0_7] : memref<8x8x128xf32, #tpu.memory_space<vmem>>, vector<8x8x128xf32>
    tpu.vector_store %arg3[%c0_5, %c0_6, %c0_7], %3 {strides = array<i32>} : memref<8x8x128xf32, #tpu.memory_space<vmem>>, vector<8x8x128xf32>,
    return
  }
  func.func @transform_0(%arg0: i32) -> (i32, i32, i32) {
    %c0_i32 = arith.constant 0 : i32
    %c0_i32_0 = arith.constant 0 : i32
    %c0_i32_1 = arith.constant 0 : i32
    return %arg0, %c0_i32, %c0_i32_0 : i32, i32, i32
  }
  func.func @transform_1(%arg0: i32) -> (i32, i32, i32) {
    %c0_i32 = arith.constant 0 : i32
    %c0_i32_0 = arith.constant 0 : i32
    %c0_i32_1 = arith.constant 0 : i32
    return %arg0, %c0_i32, %c0_i32_0 : i32, i32, i32
  }
  func.func @transform_2(%arg0: i32) -> (i32, i32, i32) {
    %c0_i32 = arith.constant 0 : i32
    %c0_i32_0 = arith.constant 0 : i32
    %c0_i32_1 = arith.constant 0 : i32
    return %arg0, %c0_i32, %c0_i32_0 : i32, i32, i32
  }
}

</mosaic_0001>

<llo_original>
// kernel: tpu_custom_call.1
$region0: #{tpu_custom_call.1}
  #allocation0 [shape = 'u32[]', space=smem, size = 0x4, offset = 0x4, fixed_abs, tag = 'smem constant byte address 0x4 - core index']
  #allocation1 [shape = 'u32[72,128]{1,0:T(1,128)}', space=vmem, size = 0x9000, scoped, tag = 'internal scratch']
  %s0 = inlined_call_operand.hbm [shape: f32[8,8,128], index: 0, kind: input, shape index: {}]
  %s1 = inlined_call_operand.hbm [shape: f32[5000,1,128], index: 1, kind: input, shape index: {}]
  %s2 = inlined_call_operand.hbm [shape: f32[8,8,128], index: 2, kind: output, shape index: {}]
  %s3 = sld [smem:[#allocation0]]
  $region26: #{tpu_custom_call.1} parent=0
    _
  %s5 = ssub.s32 1, %s3
  %s6 = scalar_select 0, %s5, %s3
  $region1: #{tpu_custom_call.1} parent=0
    #allocation2 [shape = 'u8[32768]{0}', space=vmem, size = 0x8000, scoped, tag = 'input window, operand 0, single buffered']
    #allocation3 [shape = 's32[1]{0}', space=sflag, size = 0x4, scoped, tag = 'scoped memory for tpu_custom_call.1']
    #allocation4 [shape = 's32[1]{0}', space=sflag, size = 0x4, scoped, tag = 'scoped memory for tpu_custom_call.1']
    #allocation5 [shape = 'u8[4096]{0}', space=vmem, size = 0x1000, scoped, tag = 'input window, operand 1, single buffered']
    #allocation6 [shape = 's32[1]{0}', space=sflag, size = 0x4, scoped, tag = 'scoped memory for tpu_custom_call.1']
    #allocation7 [shape = 'u8[32768]{0}', space=vmem, size = 0x8000, scoped, tag = 'output window, operand 0, single buffered']
    %7 = vsyncpa [#allocation3], 0
    %8 = vsyncpa [#allocation6], 0
    %9 = vsyncpa [#allocation4], 0
    // Predicated region
    $region2: #{tpu_custom_call.1} parent=1 // pred_check
      _
    $region3: #{tpu_custom_call.1} parent=1 // pred_check_branch
      %11 = sbr.rel (0) target = $region5
    $region4: #{tpu_custom_call.1} parent=1 // pred_region
      %13 = vsyncadd [#allocation3], 0
      %s14 = sshll.u32 %s0, 4
      %s15 = int_to_ptr.hbm [resolvable:$true] %s14
      %s16 = sshll.u32 [#allocation2], 4
      %s17 = int_to_ptr.vmem [resolvable:$true] %s16
      %22 = dma.hbm_to_vmem [thread:$0]  %s15, 1024, %s17, [#allocation3], 128, 128, 8
    $region5: #{tpu_custom_call.1} parent=1 // pred_fallthru
      _
    // Predicated region
    $region6: #{tpu_custom_call.1} parent=1 // pred_check
      _
    $region7: #{tpu_custom_call.1} parent=1 // pred_check_branch
      %24 = sbr.rel (0) target = $region9
    $region8: #{tpu_custom_call.1} parent=1 // pred_region
      %26 = vsyncadd [#allocation6], 0
      %s27 = sshll.u32 %s1, 4
      %s28 = int_to_ptr.hbm [resolvable:$true] %s27
      %s29 = sshll.u32 [#allocation5], 4
      %s30 = int_to_ptr.vmem [resolvable:$true] %s29
      %35 = dma.hbm_to_vmem [thread:$0]  %s28, 128, %s30, [#allocation6], 16, 16, 1
    $region9: #{tpu_custom_call.1} parent=1 // pred_fallthru
      _
    // Predicated region
    $region10: #{tpu_custom_call.1} parent=1 // pred_check
      _
    $region11: #{tpu_custom_call.1} parent=1 // pred_check_branch
      %37 = sbr.rel (0) target = $region13
    $region12: #{tpu_custom_call.1} parent=1 // pred_region
      %39 = dma.done [#allocation3], 1024
    $region13: #{tpu_custom_call.1} parent=1 // pred_fallthru
      _
    // Predicated region
    $region14: #{tpu_custom_call.1} parent=1 // pred_check
      _
    $region15: #{tpu_custom_call.1} parent=1 // pred_check_branch
      %41 = sbr.rel (0) target = $region17
    $region16: #{tpu_custom_call.1} parent=1 // pred_region
      %43 = dma.done [#allocation6], 128
    $region17: #{tpu_custom_call.1} parent=1 // pred_fallthru
      _
    %v44 = vld [vmem:[#allocation2] sm:$0xff]
    %v45 = vld [vmem:[#allocation2 + $0x8] sm:$0xff]
    %v46 = vld [vmem:[#allocation2 + $0x10] sm:$0xff]
    %v47 = vld [vmem:[#allocation2 + $0x18] sm:$0xff]
    %v48 = vld [vmem:[#allocation2 + $0x20] sm:$0xff]
    %v49 = vld [vmem:[#allocation2 + $0x28] sm:$0xff]
    %v50 = vld [vmem:[#allocation2 + $0x30] sm:$0xff]
    %v51 = vld [vmem:[#allocation2 + $0x38] sm:$0xff]
    %v52 = vld [vmem:[#allocation5] sm:$0x1]
    %v53 = vld [vmem:[#allocation5 + $0x1] sm:$0x1]
    %v54 = vld [vmem:[#allocation5 + $0x2] sm:$0x1]
    %v55 = vld [vmem:[#allocation5 + $0x3] sm:$0x1]
    %v56 = vld [vmem:[#allocation5 + $0x4] sm:$0x1]
    %v57 = vld [vmem:[#allocation5 + $0x5] sm:$0x1]
    %v58 = vld [vmem:[#allocation5 + $0x6] sm:$0x1]
    %v59 = vld [vmem:[#allocation5 + $0x7] sm:$0x1]
    %v68 = vperm.slane %v52, 0
    %v69 = vperm.slane %v53, 0
    %v70 = vperm.slane %v54, 0
    %v71 = vperm.slane %v55, 0
    %v72 = vperm.slane %v56, 0
    %v73 = vperm.slane %v57, 0
    %v74 = vperm.slane %v58, 0
    %v75 = vperm.slane %v59, 0
    %v84 = vadd.f32 %v44, %v68
    %v85 = vadd.f32 %v45, %v69
    %v86 = vadd.f32 %v46, %v70
    %v87 = vadd.f32 %v47, %v71
    %v88 = vadd.f32 %v48, %v72
    %v89 = vadd.f32 %v49, %v73
    %v90 = vadd.f32 %v50, %v74
    %v91 = vadd.f32 %v51, %v75
    %92 = vst [vmem:[#allocation7] sm:$0xff] %v84
    %93 = vst [vmem:[#allocation7 + $0x8] sm:$0xff] %v85
    %94 = vst [vmem:[#allocation7 + $0x10] sm:$0xff] %v86
    %95 = vst [vmem:[#allocation7 + $0x18] sm:$0xff] %v87
    %96 = vst [vmem:[#allocation7 + $0x20] sm:$0xff] %v88
    %97 = vst [vmem:[#allocation7 + $0x28] sm:$0xff] %v89
    %98 = vst [vmem:[#allocation7 + $0x30] sm:$0xff] %v90
    %99 = vst [vmem:[#allocation7 + $0x38] sm:$0xff] %v91
    // Predicated region
    $region18: #{tpu_custom_call.1} parent=1 // pred_check
      _
    $region19: #{tpu_custom_call.1} parent=1 // pred_check_branch
      %101 = sbr.rel (0) target = $region21
    $region20: #{tpu_custom_call.1} parent=1 // pred_region
      %103 = vsyncadd [#allocation4], 0
      %s104 = sshll.u32 [#allocation7], 4
      %s105 = int_to_ptr.vmem [resolvable:$true] %s104
      %s106 = sshll.u32 %s2, 4
      %s107 = int_to_ptr.hbm [resolvable:$true] %s106
      %112 = dma.vmem_to_hbm [thread:$0]  %s105, 1024, %s107, [#allocation4], 128, 128, 8
    $region21: #{tpu_custom_call.1} parent=1 // pred_fallthru
      _
    // Predicated region
    $region22: #{tpu_custom_call.1} parent=1 // pred_check
      _
    $region23: #{tpu_custom_call.1} parent=1 // pred_check_branch
      %114 = sbr.rel (0) target = $region25
    $region24: #{tpu_custom_call.1} parent=1 // pred_region
      %116 = dma.done [#allocation4], 1024
    $region25: #{tpu_custom_call.1} parent=1 // pred_fallthru
      _
    %117 = vsyncpa [#allocation3], 1
    %118 = vsyncpa [#allocation6], 1
    %119 = vsyncpa [#allocation4], 1

</llo_original>
